<compile_context>
chip_gen: v5e
topology: v5e:2x2
jax: 0.10.0
libtpu: 0.0.40
codegen_flags: <defaults>
</compile_context>

<pallas_src>
import math

import jax
import jax.numpy as jnp
from jax import lax
from jax.experimental import pallas as pl
from jax.experimental.pallas import tpu as pltpu


NEG_INF = -1e30  # matches mask_logits in the PyTorch module


def _cq_attention_kernel(c_ref, q_ref, cmask_ref, qmask_ref,
                         w4c_ref, w4q_ref, w4mlu_ref, bias_ref, o_ref):
    f32 = jnp.float32
    c = c_ref[0].astype(f32)         # (Lc, d)
    q = q_ref[0].astype(f32)         # (Lq, d)
    cm = cmask_ref[0].astype(f32)    # (Lc, 1)
    qm = qmask_ref[0].astype(f32)    # (1, Lq)
    w4c = w4c_ref[...].astype(f32)   # (1, d)
    w4q = w4q_ref[...].astype(f32)   # (1, d)
    w4mlu = w4mlu_ref[...].astype(f32)  # (1, d)
    bias = bias_ref[...].astype(f32)    # (1, 1)

    # ---- trilinear similarity S (Lc, Lq) -------------------------------
    # sub0[i] = sum_d c[i,d]*w4C[d];  sub1[j] = sum_d q[j,d]*w4Q[d]
    # sub2[i,j] = sum_d c[i,d]*w4mlu[d]*q[j,d]
    sub0 = jnp.sum(c * w4c, axis=-1, keepdims=True)                 # (Lc, 1)
    sub1 = lax.dot_general(w4q, q, (((1,), (1,)), ((), ())),
                           preferred_element_type=f32)              # (1, Lq)
    sub2 = lax.dot_general(c * w4mlu, q, (((1,), (1,)), ((), ())),
                           preferred_element_type=f32)              # (Lc, Lq)
    s = sub2 + sub0 + sub1 + bias

    # ---- masked softmaxes ----------------------------------------------
    # S1: mask over query positions, softmax along Lq (lane axis).
    logits_q = s * qm + (1.0 - qm) * NEG_INF
    m1 = jnp.max(logits_q, axis=-1, keepdims=True)
    e1 = jnp.exp(logits_q - m1)
    s1 = e1 / jnp.sum(e1, axis=-1, keepdims=True)                   # (Lc, Lq)

    # S2: mask over context positions, softmax along Lc (sublane axis).
    logits_c = s * cm + (1.0 - cm) * NEG_INF
    m2 = jnp.max(logits_c, axis=0, keepdims=True)
    e2 = jnp.exp(logits_c - m2)
    s2 = e2 / jnp.sum(e2, axis=0, keepdims=True)                    # (Lc, Lq)

    # ---- attention outputs ----------------------------------------------
    a = jnp.dot(s1, q, preferred_element_type=f32)                  # (Lc, d)
    s12 = lax.dot_general(s1, s2, (((1,), (1,)), ((), ())),
                          preferred_element_type=f32)               # (Lc, Lc)
    bm = jnp.dot(s12, c, preferred_element_type=f32)                # (Lc, d)

    out = jnp.concatenate([c, a, c * a, c * bm], axis=-1)           # (Lc, 4d)
    o_ref[0] = out.astype(o_ref.dtype)


def cq_attention(C, Q, Cmask, Qmask, w4C, w4Q, w4mlu, bias):
    """Eval-mode forward of CQAttention.

    Args:
      C: (B, d_model, Lc), Q: (B, d_model, Lq)   (PyTorch NCL layout)
      Cmask: (B, Lc), Qmask: (B, Lq)             (1.0 = keep, 0.0 = pad)
      w4C: (d_model, 1), w4Q: (d_model, 1), w4mlu: (1, 1, d_model), bias: (1,)
    Returns:
      (B, 4*d_model, Lc)
    """
    B, d, Lc = C.shape
    Lq = Q.shape[2]

    ct = jnp.transpose(C, (0, 2, 1))                     # (B, Lc, d)
    qt = jnp.transpose(Q, (0, 2, 1))                     # (B, Lq, d)
    cm = Cmask.astype(jnp.float32).reshape(B, Lc, 1)
    qm = Qmask.astype(jnp.float32).reshape(B, 1, Lq)
    w4c = w4C.astype(jnp.float32).reshape(1, d)
    w4q = w4Q.astype(jnp.float32).reshape(1, d)
    w4m = w4mlu.astype(jnp.float32).reshape(1, d)
    b2 = bias.astype(jnp.float32).reshape(1, 1)

    flops = 2 * B * (Lc * Lq * d       # sub2
                     + Lq * d          # sub1
                     + Lc * Lq * d     # A = S1 @ Q
                     + Lc * Lc * Lq    # S1 @ S2^T
                     + Lc * Lc * d)    # Bm
    bytes_accessed = 4 * (B * (Lc * d + Lq * d + Lc + Lq + 4 * Lc * d)
                          + 3 * d + 1)

    out = pl.pallas_call(
        _cq_attention_kernel,
        out_shape=jax.ShapeDtypeStruct((B, Lc, 4 * d), C.dtype),
        grid_spec=pltpu.PrefetchScalarGridSpec(
            num_scalar_prefetch=0,
            grid=(B,),
            in_specs=[
                pl.BlockSpec((1, Lc, d), lambda b: (b, 0, 0)),   # Ct
                pl.BlockSpec((1, Lq, d), lambda b: (b, 0, 0)),   # Qt
                pl.BlockSpec((1, Lc, 1), lambda b: (b, 0, 0)),   # Cmask
                pl.BlockSpec((1, 1, Lq), lambda b: (b, 0, 0)),   # Qmask
                pl.BlockSpec((1, d), lambda b: (0, 0)),          # w4C (resident)
                pl.BlockSpec((1, d), lambda b: (0, 0)),          # w4Q (resident)
                pl.BlockSpec((1, d), lambda b: (0, 0)),          # w4mlu (resident)
                pl.BlockSpec((1, 1), lambda b: (0, 0)),          # bias (resident)
            ],
            out_specs=pl.BlockSpec((1, Lc, 4 * d), lambda b: (b, 0, 0)),
        ),
        compiler_params=pltpu.CompilerParams(
            dimension_semantics=("parallel",),
        ),
        cost_estimate=pl.CostEstimate(
            flops=flops,
            transcendentals=2 * B * Lc * Lq,
            bytes_accessed=bytes_accessed,
        ),
    )(ct, qt, cm, qm, w4c, w4q, w4m, b2)

    return jnp.transpose(out, (0, 2, 1))                 # (B, 4d, Lc)


# ----------------------- reference & parameter init -------------------------

def cq_attention_ref(C, Q, Cmask, Qmask, w4C, w4Q, w4mlu, bias):
    hp = jax.lax.Precision.HIGHEST
    ct = jnp.transpose(C, (0, 2, 1))
    qt = jnp.transpose(Q, (0, 2, 1))
    B, Lc, _ = ct.shape
    Lq = qt.shape[1]
    sub0 = jnp.matmul(ct, w4C, precision=hp)                             # (B,Lc,1)
    sub1 = jnp.transpose(jnp.matmul(qt, w4Q, precision=hp), (0, 2, 1))   # (B,1,Lq)
    sub2 = jnp.matmul(ct * w4mlu, jnp.transpose(qt, (0, 2, 1)), precision=hp)
    s = sub0 + sub1 + sub2 + bias
    cm = Cmask.astype(jnp.float32).reshape(B, Lc, 1)
    qm = Qmask.astype(jnp.float32).reshape(B, 1, Lq)
    s1 = jax.nn.softmax(s * qm + (1 - qm) * NEG_INF, axis=2)
    s2 = jax.nn.softmax(s * cm + (1 - cm) * NEG_INF, axis=1)
    a = jnp.matmul(s1, qt, precision=hp)
    bm = jnp.matmul(jnp.matmul(s1, jnp.transpose(s2, (0, 2, 1)), precision=hp),
                    ct, precision=hp)
    out = jnp.concatenate([ct, a, ct * a, ct * bm], axis=2)
    return jnp.transpose(out, (0, 2, 1))


def init_cq_attention_params(key, d_model):
    # Mirrors the PyTorch __init__ (xavier_uniform_, bias = 0).
    k1, k2, k3 = jax.random.split(key, 3)
    b_vec = math.sqrt(6.0 / (1 + d_model))          # (d,1): fan_in=1, fan_out=d
    w4C = jax.random.uniform(k1, (d_model, 1), jnp.float32, -b_vec, b_vec)
    w4Q = jax.random.uniform(k2, (d_model, 1), jnp.float32, -b_vec, b_vec)
    b_mlu = math.sqrt(6.0 / (2 * d_model))          # (1,1,d): fan_in=fan_out=d
    w4mlu = jax.random.uniform(k3, (1, 1, d_model), jnp.float32, -b_mlu, b_mlu)
    bias = jnp.zeros((1,), jnp.float32)
    return w4C, w4Q, w4mlu, bias


if __name__ == "__main__":
    key = jax.random.PRNGKey(0)
    k_c, k_q, k_p = jax.random.split(key, 3)

    batch, d_model, Lc, Lq = 2, 32, 16, 8
    C = jax.random.normal(k_c, (batch, d_model, Lc), jnp.float32)
    Q = jax.random.normal(k_q, (batch, d_model, Lq), jnp.float32)

    # Padding masks: batch 0 fully valid, batch 1 partially padded.
    c_lens = jnp.array([Lc, 12], jnp.int32)
    q_lens = jnp.array([Lq, 5], jnp.int32)
    Cmask = (jnp.arange(Lc)[None, :] < c_lens[:, None]).astype(jnp.float32)
    Qmask = (jnp.arange(Lq)[None, :] < q_lens[:, None]).astype(jnp.float32)

    w4C, w4Q, w4mlu, bias = init_cq_attention_params(k_p, d_model)

    out = cq_attention(C, Q, Cmask, Qmask, w4C, w4Q, w4mlu, bias)
    out = jax.block_until_ready(out)

    ref = cq_attention_ref(C, Q, Cmask, Qmask, w4C, w4Q, w4mlu, bias)

    assert out.shape == (batch, 4 * d_model, Lc)
    assert bool(jnp.all(jnp.isfinite(out)))
    max_err = float(jnp.max(jnp.abs(out - ref)))
    assert jnp.allclose(out, ref, atol=2e-3, rtol=2e-3), max_err

    print("KERNEL_OK")
</pallas_src>

<mosaic_0001>
module attributes {stable_mosaic.version = 11 : i64} {
  func.func @_cq_attention_kernel(%arg0: i32, %arg1: memref<1x16x32xf32, #tpu.memory_space<vmem>>, %arg2: memref<1x8x32xf32, #tpu.memory_space<vmem>>, %arg3: memref<1x16x1xf32, #tpu.memory_space<vmem>>, %arg4: memref<1x1x8xf32, #tpu.memory_space<vmem>>, %arg5: memref<1x32xf32, #tpu.memory_space<vmem>>, %arg6: memref<1x32xf32, #tpu.memory_space<vmem>>, %arg7: memref<1x32xf32, #tpu.memory_space<vmem>>, %arg8: memref<1x1xf32, #tpu.memory_space<vmem>>, %arg9: memref<1x16x128xf32, #tpu.memory_space<vmem>>) attributes {dimension_semantics = [#tpu.dimension_semantics<parallel>], iteration_bounds = array<i64: 2>, scalar_prefetch = 0 : i64, scratch_operands = 0 : i64, tpu.core_type = #tpu.core_type<tc>, window_params = [{transform_indices = @transform_0, window_bounds = array<i64: 1, 16, 32>}, {transform_indices = @transform_1, window_bounds = array<i64: 1, 8, 32>}, {transform_indices = @transform_2, window_bounds = array<i64: 1, 16, 1>}, {transform_indices = @transform_3, window_bounds = array<i64: 1, 1, 8>}, {pipeline_mode = #tpu.pipeline_mode<synchronous>, transform_indices = @transform_4, window_bounds = array<i64: 1, 32>}, {pipeline_mode = #tpu.pipeline_mode<synchronous>, transform_indices = @transform_5, window_bounds = array<i64: 1, 32>}, {pipeline_mode = #tpu.pipeline_mode<synchronous>, transform_indices = @transform_6, window_bounds = array<i64: 1, 32>}, {pipeline_mode = #tpu.pipeline_mode<synchronous>, transform_indices = @transform_7, window_bounds = array<i64: 1, 1>}, {transform_indices = @transform_8, window_bounds = array<i64: 1, 16, 128>}]} {
    %c0 = arith.constant 0 : index
    %c0_0 = arith.constant 0 : index
    %c0_1 = arith.constant 0 : index
    %0 = vector.load %arg1[%c0, %c0_0, %c0_1] : memref<1x16x32xf32, #tpu.memory_space<vmem>>, vector<1x16x32xf32>
    %1 = vector.shape_cast %0 : vector<1x16x32xf32> to vector<16x32xf32>
    %c0_2 = arith.constant 0 : index
    %c0_3 = arith.constant 0 : index
    %c0_4 = arith.constant 0 : index
    %2 = vector.load %arg2[%c0_2, %c0_3, %c0_4] : memref<1x8x32xf32, #tpu.memory_space<vmem>>, vector<1x8x32xf32>
    %3 = vector.shape_cast %2 : vector<1x8x32xf32> to vector<8x32xf32>
    %c0_5 = arith.constant 0 : index
    %c0_6 = arith.constant 0 : index
    %c0_7 = arith.constant 0 : index
    %4 = vector.load %arg3[%c0_5, %c0_6, %c0_7] : memref<1x16x1xf32, #tpu.memory_space<vmem>>, vector<1x16x1xf32>
    %5 = vector.shape_cast %4 : vector<1x16x1xf32> to vector<16x1xf32>
    %c0_8 = arith.constant 0 : index
    %c0_9 = arith.constant 0 : index
    %c0_10 = arith.constant 0 : index
    %6 = vector.load %arg4[%c0_8, %c0_9, %c0_10] : memref<1x1x8xf32, #tpu.memory_space<vmem>>, vector<1x1x8xf32>
    %7 = vector.shape_cast %6 : vector<1x1x8xf32> to vector<1x8xf32>
    %c0_11 = arith.constant 0 : index
    %c0_12 = arith.constant 0 : index
    %8 = vector.load %arg5[%c0_11, %c0_12] : memref<1x32xf32, #tpu.memory_space<vmem>>, vector<1x32xf32>
    %c0_13 = arith.constant 0 : index
    %c0_14 = arith.constant 0 : index
    %9 = vector.load %arg6[%c0_13, %c0_14] : memref<1x32xf32, #tpu.memory_space<vmem>>, vector<1x32xf32>
    %c0_15 = arith.constant 0 : index
    %c0_16 = arith.constant 0 : index
    %10 = vector.load %arg7[%c0_15, %c0_16] : memref<1x32xf32, #tpu.memory_space<vmem>>, vector<1x32xf32>
    %c0_17 = arith.constant 0 : index
    %c0_18 = arith.constant 0 : index
    %11 = vector.load %arg8[%c0_17, %c0_18] : memref<1x1xf32, #tpu.memory_space<vmem>>, vector<1x1xf32>
    %12 = vector.broadcast %8 : vector<1x32xf32> to vector<16x32xf32>
    %13 = arith.mulf %1, %12 : vector<16x32xf32>
    %cst = arith.constant dense<0.000000e+00> : vector<16xf32>
    %14 = vector.multi_reduction <add>, %13, %cst [1] : vector<16x32xf32> to vector<16xf32>
    %15 = vector.shape_cast %14 : vector<16xf32> to vector<16x1xf32>
    %cst_19 = arith.constant dense<0.000000e+00> : vector<1x8xf32>
    %16 = tpu.matmul %9, %3, %cst_19 {dimension_numbers = #tpu.dot_dimension_numbers<[1], [1], [0], [0], [0, 0, 1, 0], [], []>} : vector<1x32xf32>, vector<8x32xf32>, vector<1x8xf32> -> vector<1x8xf32>
    %17 = vector.broadcast %10 : vector<1x32xf32> to vector<16x32xf32>
    %18 = arith.mulf %1, %17 : vector<16x32xf32>
    %cst_20 = arith.constant dense<0.000000e+00> : vector<16x8xf32>
    %19 = tpu.matmul %18, %3, %cst_20 {dimension_numbers = #tpu.dot_dimension_numbers<[1], [1], [0], [0], [0, 0, 1, 0], [], []>} : vector<16x32xf32>, vector<8x32xf32>, vector<16x8xf32> -> vector<16x8xf32>
    %20 = vector.broadcast %15 : vector<16x1xf32> to vector<16x8xf32>
    %21 = arith.addf %19, %20 : vector<16x8xf32>
    %22 = vector.broadcast %16 : vector<1x8xf32> to vector<16x8xf32>
    %23 = arith.addf %21, %22 : vector<16x8xf32>
    %24 = vector.broadcast %11 : vector<1x1xf32> to vector<16x8xf32>
    %25 = arith.addf %23, %24 : vector<16x8xf32>
    %26 = vector.broadcast %7 : vector<1x8xf32> to vector<16x8xf32>
    %27 = arith.mulf %25, %26 : vector<16x8xf32>
    %cst_21 = arith.constant 1.000000e+00 : f32
    %28 = vector.broadcast %cst_21 : f32 to vector<1x8xf32>
    %29 = arith.subf %28, %7 : vector<1x8xf32>
    %cst_22 = arith.constant -1.000000e+30 : f32
    %30 = vector.broadcast %cst_22 : f32 to vector<1x8xf32>
    %31 = arith.mulf %29, %30 : vector<1x8xf32>
    %32 = vector.broadcast %31 : vector<1x8xf32> to vector<16x8xf32>
    %33 = arith.addf %27, %32 : vector<16x8xf32>
    %cst_23 = arith.constant dense<0xFF800000> : vector<16xf32>
    %34 = vector.multi_reduction <maximumf>, %33, %cst_23 [1] : vector<16x8xf32> to vector<16xf32>
    %35 = vector.shape_cast %34 : vector<16xf32> to vector<16x1xf32>
    %36 = vector.broadcast %35 : vector<16x1xf32> to vector<16x8xf32>
    %37 = arith.subf %33, %36 : vector<16x8xf32>
    %38 = math.exp %37 : vector<16x8xf32>
    %cst_24 = arith.constant dense<0.000000e+00> : vector<16xf32>
    %39 = vector.multi_reduction <add>, %38, %cst_24 [1] : vector<16x8xf32> to vector<16xf32>
    %40 = vector.shape_cast %39 : vector<16xf32> to vector<16x1xf32>
    %41 = vector.broadcast %40 : vector<16x1xf32> to vector<16x8xf32>
    %42 = arith.divf %38, %41 : vector<16x8xf32>
    %43 = vector.broadcast %5 : vector<16x1xf32> to vector<16x8xf32>
    %44 = arith.mulf %25, %43 : vector<16x8xf32>
    %cst_25 = arith.constant 1.000000e+00 : f32
    %45 = vector.broadcast %cst_25 : f32 to vector<16x1xf32>
    %46 = arith.subf %45, %5 : vector<16x1xf32>
    %cst_26 = arith.constant -1.000000e+30 : f32
    %47 = vector.broadcast %cst_26 : f32 to vector<16x1xf32>
    %48 = arith.mulf %46, %47 : vector<16x1xf32>
    %49 = vector.broadcast %48 : vector<16x1xf32> to vector<16x8xf32>
    %50 = arith.addf %44, %49 : vector<16x8xf32>
    %cst_27 = arith.constant dense<0xFF800000> : vector<8xf32>
    %51 = vector.multi_reduction <maximumf>, %50, %cst_27 [0] : vector<16x8xf32> to vector<8xf32>
    %52 = vector.shape_cast %51 : vector<8xf32> to vector<1x8xf32>
    %53 = vector.broadcast %52 : vector<1x8xf32> to vector<16x8xf32>
    %54 = arith.subf %50, %53 : vector<16x8xf32>
    %55 = math.exp %54 : vector<16x8xf32>
    %cst_28 = arith.constant dense<0.000000e+00> : vector<8xf32>
    %56 = vector.multi_reduction <add>, %55, %cst_28 [0] : vector<16x8xf32> to vector<8xf32>
    %57 = vector.shape_cast %56 : vector<8xf32> to vector<1x8xf32>
    %58 = vector.broadcast %57 : vector<1x8xf32> to vector<16x8xf32>
    %59 = arith.divf %55, %58 : vector<16x8xf32>
    %cst_29 = arith.constant dense<0.000000e+00> : vector<16x32xf32>
    %60 = tpu.matmul %42, %3, %cst_29 {dimension_numbers = #tpu.dot_dimension_numbers<[1], [0], [0], [1], [0, 0, 1, 1], [], []>} : vector<16x8xf32>, vector<8x32xf32>, vector<16x32xf32> -> vector<16x32xf32>
    %cst_30 = arith.constant dense<0.000000e+00> : vector<16x16xf32>
    %61 = tpu.matmul %42, %59, %cst_30 {dimension_numbers = #tpu.dot_dimension_numbers<[1], [1], [0], [0], [0, 0, 1, 0], [], []>} : vector<16x8xf32>, vector<16x8xf32>, vector<16x16xf32> -> vector<16x16xf32>
    %cst_31 = arith.constant dense<0.000000e+00> : vector<16x32xf32>
    %62 = tpu.matmul %61, %1, %cst_31 {dimension_numbers = #tpu.dot_dimension_numbers<[1], [0], [0], [1], [0, 0, 1, 1], [], []>} : vector<16x16xf32>, vector<16x32xf32>, vector<16x32xf32> -> vector<16x32xf32>
    %63 = arith.mulf %1, %60 : vector<16x32xf32>
    %64 = arith.mulf %1, %62 : vector<16x32xf32>
    %65 = tpu.concatenate %1, %60, %63, %64 in 1 : vector<16x32xf32>, vector<16x32xf32>, vector<16x32xf32>, vector<16x32xf32> -> vector<16x128xf32>
    %c0_32 = arith.constant 0 : index
    %c0_33 = arith.constant 0 : index
    %c0_34 = arith.constant 0 : index
    %66 = vector.load %arg9[%c0_32, %c0_33, %c0_34] : memref<1x16x128xf32, #tpu.memory_space<vmem>>, vector<1x16x128xf32>
    %67 = vector.shape_cast %66 : vector<1x16x128xf32> to vector<16x128xf32>
    %68 = vector.shape_cast %65 : vector<16x128xf32> to vector<1x16x128xf32>
    tpu.vector_store %arg9[%c0_32, %c0_33, %c0_34], %68 {strides = array<i32>} : memref<1x16x128xf32, #tpu.memory_space<vmem>>, vector<1x16x128xf32>,
    return
  }
  func.func @transform_0(%arg0: i32) -> (i32, i32, i32) {
    %c0_i32 = arith.constant 0 : i32
    %c0_i32_0 = arith.constant 0 : i32
    %c0_i32_1 = arith.constant 0 : i32
    return %arg0, %c0_i32, %c0_i32_0 : i32, i32, i32
  }
  func.func @transform_1(%arg0: i32) -> (i32, i32, i32) {
    %c0_i32 = arith.constant 0 : i32
    %c0_i32_0 = arith.constant 0 : i32
    %c0_i32_1 = arith.constant 0 : i32
    return %arg0, %c0_i32, %c0_i32_0 : i32, i32, i32
  }
  func.func @transform_2(%arg0: i32) -> (i32, i32, i32) {
    %c0_i32 = arith.constant 0 : i32
    %c0_i32_0 = arith.constant 0 : i32
    %c0_i32_1 = arith.constant 0 : i32
    return %arg0, %c0_i32, %c0_i32_0 : i32, i32, i32
  }
  func.func @transform_3(%arg0: i32) -> (i32, i32, i32) {
    %c0_i32 = arith.constant 0 : i32
    %c0_i32_0 = arith.constant 0 : i32
    %c0_i32_1 = arith.constant 0 : i32
    return %arg0, %c0_i32, %c0_i32_0 : i32, i32, i32
  }
  func.func @transform_4(%arg0: i32) -> (i32, i32) {
    %c0_i32 = arith.constant 0 : i32
    %c0_i32_0 = arith.constant 0 : i32
    %c0_i32_1 = arith.constant 0 : i32
    return %c0_i32, %c0_i32_0 : i32, i32
  }
  func.func @transform_5(%arg0: i32) -> (i32, i32) {
    %c0_i32 = arith.constant 0 : i32
    %c0_i32_0 = arith.constant 0 : i32
    %c0_i32_1 = arith.constant 0 : i32
    return %c0_i32, %c0_i32_0 : i32, i32
  }
  func.func @transform_6(%arg0: i32) -> (i32, i32) {
    %c0_i32 = arith.constant 0 : i32
    %c0_i32_0 = arith.constant 0 : i32
    %c0_i32_1 = arith.constant 0 : i32
    return %c0_i32, %c0_i32_0 : i32, i32
  }
  func.func @transform_7(%arg0: i32) -> (i32, i32) {
    %c0_i32 = arith.constant 0 : i32
    %c0_i32_0 = arith.constant 0 : i32
    %c0_i32_1 = arith.constant 0 : i32
    return %c0_i32, %c0_i32_0 : i32, i32
  }
  func.func @transform_8(%arg0: i32) -> (i32, i32, i32) {
    %c0_i32 = arith.constant 0 : i32
    %c0_i32_0 = arith.constant 0 : i32
    %c0_i32_1 = arith.constant 0 : i32
    return %arg0, %c0_i32, %c0_i32_0 : i32, i32, i32
  }
}

</mosaic_0001>

<llo_original>
// kernel: tpu_custom_call.1
$region0: #{tpu_custom_call.1}
  #allocation0 [shape = 'u32[]', space=smem, size = 0x4, offset = 0x4, fixed_abs, tag = 'smem constant byte address 0x4 - core index']
  #allocation1 [shape = 'u32[72,128]{1,0:T(1,128)}', space=vmem, size = 0x9000, scoped, tag = 'internal scratch']
  #allocation2 [shape = 'f32[1,1]{1,0:T(1,128)S(1)}', space=vmem, size = 0x200, scoped, tag = 'scoped memory for tpu_custom_call.1']
  %s0 = inlined_call_operand.vmem [shape: f32[2,16,32], index: 0, kind: input, shape index: {}]
  %s1 = inlined_call_operand.hbm [shape: f32[2,8,32], index: 1, kind: input, shape index: {}]
  %s2 = inlined_call_operand.vmem [shape: f32[2,16,1], index: 2, kind: input, shape index: {}]
  %s3 = inlined_call_operand.vmem [shape: f32[2,1,8], index: 3, kind: input, shape index: {}]
  %s4 = inlined_call_operand.vmem [shape: f32[1,32], index: 4, kind: input, shape index: {}]
  %s5 = inlined_call_operand.vmem [shape: f32[1,32], index: 5, kind: input, shape index: {}]
  %s6 = inlined_call_operand.vmem [shape: f32[1,32], index: 6, kind: input, shape index: {}]
  %s7 = inlined_call_operand.<no memory space> [shape: f32[1,1], index: 7, kind: input, shape index: {}]
  %s8 = inlined_call_operand.hbm [shape: f32[2,16,128], index: 8, kind: output, shape index: {}]
  %s9 = sld [smem:[#allocation0]]
  $region69: #{tpu_custom_call.1} parent=0
    _
  %s11 = ssub.s32 1, %s9
  %s12 = scalar_select 0, %s11, %s9
  %v13 = vstv %s7
  %14 = vst [vmem:[#allocation2] sm:$0x1] %v13
  $region1: #{tpu_custom_call.1} parent=0
    #allocation3 [shape = 'u8[8192]{0}', space=vmem, size = 0x2000, scoped, tag = 'input window, operand 1']
    #allocation4 [shape = 's32[2]{0}', space=sflag, size = 0x8, scoped, tag = 'scoped memory for tpu_custom_call.1']
    #allocation5 [shape = 's32[2]{0}', space=sflag, size = 0x8, scoped, tag = 'scoped memory for tpu_custom_call.1']
    #allocation6 [shape = 'u8[16384]{0}', space=vmem, size = 0x4000, scoped, tag = 'output window, operand 0']
    %15 = vsyncpa [#allocation4], 0
    %s16 = scalar_lea.sflag [#allocation4], 1
    %17 = vsyncpa %s16, 0
    %18 = vsyncpa [#allocation5], 0
    %s19 = scalar_lea.sflag [#allocation5], 1
    %20 = vsyncpa %s19, 0
    loop: start=0, step=1, limit=4
    $region2: #{tpu_custom_call.1} parent=1 // loop_pre_header
      _
    $region3: #{tpu_custom_call.1} parent=1 // loop_header
      %s22 = sphi 0, %s26
      %p23 = scmp.ge.s32.totalorder %s22, 4
      %s32 = sphi 0, %s34
      %s35 = sphi 0, %s32
      %s36 = sphi 0, %s35
      %s52 = sphi 0, %s36
      %s58 = sphi 0, %s60
      %s61 = sphi 0, %s58
      %s62 = sphi 0, %s61
      %s78 = sphi 0, %s62
      %s84 = sphi 0, %s86
      %s87 = sphi 0, %s84
      %s88 = sphi 0, %s87
      %s104 = sphi 0, %s88
      %s110 = sphi 0, %s112
      %s113 = sphi 0, %s110
      %s114 = sphi 0, %s113
      %s130 = sphi 0, %s114
      %s134 = sphi 0, %s134
      %s136 = sphi 0, %s134
      %s137 = sphi 0, %s136
      %s151 = sphi 0, %s137
      %s155 = sphi 0, %s155
      %s157 = sphi 0, %s155
      %s158 = sphi 0, %s157
      %s172 = sphi 0, %s158
      %s176 = sphi 0, %s176
      %s178 = sphi 0, %s176
      %s179 = sphi 0, %s178
      %s193 = sphi 0, %s179
      %s197 = sphi 0, %s197
      %s199 = sphi 0, %s197
      %s200 = sphi 0, %s199
      %s214 = sphi 0, %s200
      %s220 = sphi 0, %s222
      %s223 = sphi 0, %s220
      %s224 = sphi 0, %s223
      %s240 = sphi 0, %s224
    $region4: #{tpu_custom_call.1} parent=1 // loop_header_branch
      %25 = sbr.rel (%p23) target = $region8
    $region5: #{tpu_custom_call.1} parent=1 // loop_body
      %s27 = ssub.s32 %s22, 1
      %s28 = ssub.s32 %s22, 2
      %s29 = sadd.s32 %s22, 1
      %s30 = ssub.s32 %s22, %s29
      %p31 = scmp.eq.s32.totalorder %s30, 0
      %s33 = sadd.s32 %s32, 1
      %s34 = scalar_select %p31, %s32, %s33
      %p37 = pneg %p31
      %p38 = scmp.eq.s32.totalorder %s22, 1
      %p39 = por %p37, %p38
      %p40 = scmp.ne.s32.totalorder %s32, %s35
      %p41 = scmp.eq.s32.totalorder %s22, 0
      %p42 = por %p40, %p41
      %p43 = scmp.ne.s32.totalorder %s32, %s35
      %p44 = scmp.eq.s32.totalorder %s27, 1
      %p45 = por %p43, %p44
      %p46 = scmp.ne.s32.totalorder %s35, %s36
      %p47 = scmp.eq.s32.totalorder %s27, 0
      %p48 = por %p46, %p47
      %p49 = scmp.ne.s32.totalorder %s35, %s36
      %p50 = scmp.eq.s32.totalorder %s28, 1
      %p51 = por %p49, %p50
      %p53 = scmp.ne.s32.totalorder %s36, %s52
      %p54 = scmp.eq.s32.totalorder %s28, 0
      %p55 = por %p53, %p54
      %s56 = ssub.s32 %s22, %s29
      %p57 = scmp.eq.s32.totalorder %s56, 0
      %s59 = sadd.s32 %s58, 1
      %s60 = scalar_select %p57, %s58, %s59
      %p63 = pneg %p57
      %p64 = scmp.eq.s32.totalorder %s22, 1
      %p65 = por %p63, %p64
      %p66 = scmp.ne.s32.totalorder %s58, %s61
      %p67 = scmp.eq.s32.totalorder %s22, 0
      %p68 = por %p66, %p67
      %p69 = scmp.ne.s32.totalorder %s58, %s61
      %p70 = scmp.eq.s32.totalorder %s27, 1
      %p71 = por %p69, %p70
      %p72 = scmp.ne.s32.totalorder %s61, %s62
      %p73 = scmp.eq.s32.totalorder %s27, 0
      %p74 = por %p72, %p73
      %p75 = scmp.ne.s32.totalorder %s61, %s62
      %p76 = scmp.eq.s32.totalorder %s28, 1
      %p77 = por %p75, %p76
      %p79 = scmp.ne.s32.totalorder %s62, %s78
      %p80 = scmp.eq.s32.totalorder %s28, 0
      %p81 = por %p79, %p80
      %s82 = ssub.s32 %s22, %s29
      %p83 = scmp.eq.s32.totalorder %s82, 0
      %s85 = sadd.s32 %s84, 1
      %s86 = scalar_select %p83, %s84, %s85
      %p89 = pneg %p83
      %p90 = scmp.eq.s32.totalorder %s22, 1
      %p91 = por %p89, %p90
      %p92 = scmp.ne.s32.totalorder %s84, %s87
      %p93 = scmp.eq.s32.totalorder %s22, 0
      %p94 = por %p92, %p93
      %p95 = scmp.ne.s32.totalorder %s84, %s87
      %p96 = scmp.eq.s32.totalorder %s27, 1
      %p97 = por %p95, %p96
      %p98 = scmp.ne.s32.totalorder %s87, %s88
      %p99 = scmp.eq.s32.totalorder %s27, 0
      %p100 = por %p98, %p99
      %p101 = scmp.ne.s32.totalorder %s87, %s88
      %p102 = scmp.eq.s32.totalorder %s28, 1
      %p103 = por %p101, %p102
      %p105 = scmp.ne.s32.totalorder %s88, %s104
      %p106 = scmp.eq.s32.totalorder %s28, 0
      %p107 = por %p105, %p106
      %s108 = ssub.s32 %s22, %s29
      %p109 = scmp.eq.s32.totalorder %s108, 0
      %s111 = sadd.s32 %s110, 1
      %s112 = scalar_select %p109, %s110, %s111
      %p115 = pneg %p109
      %p116 = scmp.eq.s32.totalorder %s22, 1
      %p117 = por %p115, %p116
      %p118 = scmp.ne.s32.totalorder %s110, %s113
      %p119 = scmp.eq.s32.totalorder %s22, 0
      %p120 = por %p118, %p119
      %p121 = scmp.ne.s32.totalorder %s110, %s113
      %p122 = scmp.eq.s32.totalorder %s27, 1
      %p123 = por %p121, %p122
      %p124 = scmp.ne.s32.totalorder %s113, %s114
      %p125 = scmp.eq.s32.totalorder %s27, 0
      %p126 = por %p124, %p125
      %p127 = scmp.ne.s32.totalorder %s113, %s114
      %p128 = scmp.eq.s32.totalorder %s28, 1
      %p129 = por %p127, %p128
      %p131 = scmp.ne.s32.totalorder %s114, %s130
      %p132 = scmp.eq.s32.totalorder %s28, 0
      %p133 = por %p131, %p132
      %s135 = sadd.s32 %s134, 1
      %p138 = scmp.eq.s32.totalorder %s22, 1
      %p139 = scmp.ne.s32.totalorder %s134, %s136
      %p140 = scmp.eq.s32.totalorder %s22, 0
      %p141 = por %p139, %p140
      %p142 = scmp.ne.s32.totalorder %s134, %s136
      %p143 = scmp.eq.s32.totalorder %s27, 1
      %p144 = por %p142, %p143
      %p145 = scmp.ne.s32.totalorder %s136, %s137
      %p146 = scmp.eq.s32.totalorder %s27, 0
      %p147 = por %p145, %p146
      %p148 = scmp.ne.s32.totalorder %s136, %s137
      %p149 = scmp.eq.s32.totalorder %s28, 1
      %p150 = por %p148, %p149
      %p152 = scmp.ne.s32.totalorder %s137, %s151
      %p153 = scmp.eq.s32.totalorder %s28, 0
      %p154 = por %p152, %p153
      %s156 = sadd.s32 %s155, 1
      %p159 = scmp.eq.s32.totalorder %s22, 1
      %p160 = scmp.ne.s32.totalorder %s155, %s157
      %p161 = scmp.eq.s32.totalorder %s22, 0
      %p162 = por %p160, %p161
      %p163 = scmp.ne.s32.totalorder %s155, %s157
      %p164 = scmp.eq.s32.totalorder %s27, 1
      %p165 = por %p163, %p164
      %p166 = scmp.ne.s32.totalorder %s157, %s158
      %p167 = scmp.eq.s32.totalorder %s27, 0
      %p168 = por %p166, %p167
      %p169 = scmp.ne.s32.totalorder %s157, %s158
      %p170 = scmp.eq.s32.totalorder %s28, 1
      %p171 = por %p169, %p170
      %p173 = scmp.ne.s32.totalorder %s158, %s172
      %p174 = scmp.eq.s32.totalorder %s28, 0
      %p175 = por %p173, %p174
      %s177 = sadd.s32 %s176, 1
      %p180 = scmp.eq.s32.totalorder %s22, 1
      %p181 = scmp.ne.s32.totalorder %s176, %s178
      %p182 = scmp.eq.s32.totalorder %s22, 0
      %p183 = por %p181, %p182
      %p184 = scmp.ne.s32.totalorder %s176, %s178
      %p185 = scmp.eq.s32.totalorder %s27, 1
      %p186 = por %p184, %p185
      %p187 = scmp.ne.s32.totalorder %s178, %s179
      %p188 = scmp.eq.s32.totalorder %s27, 0
      %p189 = por %p187, %p188
      %p190 = scmp.ne.s32.totalorder %s178, %s179
      %p191 = scmp.eq.s32.totalorder %s28, 1
      %p192 = por %p190, %p191
      %p194 = scmp.ne.s32.totalorder %s179, %s193
      %p195 = scmp.eq.s32.totalorder %s28, 0
      %p196 = por %p194, %p195
      %s198 = sadd.s32 %s197, 1
      %p201 = scmp.eq.s32.totalorder %s22, 1
      %p202 = scmp.ne.s32.totalorder %s197, %s199
      %p203 = scmp.eq.s32.totalorder %s22, 0
      %p204 = por %p202, %p203
      %p205 = scmp.ne.s32.totalorder %s197, %s199
      %p206 = scmp.eq.s32.totalorder %s27, 1
      %p207 = por %p205, %p206
      %p208 = scmp.ne.s32.totalorder %s199, %s200
      %p209 = scmp.eq.s32.totalorder %s27, 0
      %p210 = por %p208, %p209
      %p211 = scmp.ne.s32.totalorder %s199, %s200
      %p212 = scmp.eq.s32.totalorder %s28, 1
      %p213 = por %p211, %p212
      %p215 = scmp.ne.s32.totalorder %s200, %s214
      %p216 = scmp.eq.s32.totalorder %s28, 0
      %p217 = por %p215, %p216
      %s218 = ssub.s32 %s22, %s29
      %p219 = scmp.eq.s32.totalorder %s218, 0
      %s221 = sadd.s32 %s220, 1
      %s222 = scalar_select %p219, %s220, %s221
      %p225 = pneg %p219
      %p226 = scmp.eq.s32.totalorder %s22, 1
      %p227 = por %p225, %p226
      %p228 = scmp.ne.s32.totalorder %s220, %s223
      %p229 = scmp.eq.s32.totalorder %s22, 0
      %p230 = por %p228, %p229
      %p231 = scmp.ne.s32.totalorder %s220, %s223
      %p232 = scmp.eq.s32.totalorder %s27, 1
      %p233 = por %p231, %p232
      %p234 = scmp.ne.s32.totalorder %s223, %s224
      %p235 = scmp.eq.s32.totalorder %s27, 0
      %p236 = por %p234, %p235
      %p237 = scmp.ne.s32.totalorder %s223, %s224
      %p238 = scmp.eq.s32.totalorder %s28, 1
      %p239 = por %p237, %p238
      %p241 = scmp.ne.s32.totalorder %s224, %s240
      %p242 = scmp.eq.s32.totalorder %s28, 0
      %p243 = por %p241, %p242
      %p244 = scmp.le.s32.totalorder 1, %s22
      %p245 = scmp.lt.s32.totalorder %s22, 3
      %p246 = pnand %p244, %p245
      %p247 = pneg %p246
      // Predicated region
      $region9: #{tpu_custom_call.1} parent=5 // pred_check
        _
      $region10: #{tpu_custom_call.1} parent=5 // pred_check_branch
        %249 = sbr.rel (%p246) target = $region12
      $region11: #{tpu_custom_call.1} parent=5 // pred_region
        %s250 = ssub.s32 %s22, 1
        // Predicated region
        $region13: #{tpu_custom_call.1} parent=11 // pred_check
          %p251 = pneg %p147
        $region14: #{tpu_custom_call.1} parent=11 // pred_check_branch
          %253 = sbr.rel (%p251) target = $region16
        $region15: #{tpu_custom_call.1} parent=11 // pred_region
          _
        $region16: #{tpu_custom_call.1} parent=11 // pred_fallthru
          _
        // Predicated region
        $region17: #{tpu_custom_call.1} parent=11 // pred_check
          %p254 = pneg %p168
        $region18: #{tpu_custom_call.1} parent=11 // pred_check_branch
          %256 = sbr.rel (%p254) target = $region20
        $region19: #{tpu_custom_call.1} parent=11 // pred_region
          _
        $region20: #{tpu_custom_call.1} parent=11 // pred_fallthru
          _
        // Predicated region
        $region21: #{tpu_custom_call.1} parent=11 // pred_check
          %p257 = pneg %p189
        $region22: #{tpu_custom_call.1} parent=11 // pred_check_branch
          %259 = sbr.rel (%p257) target = $region24
        $region23: #{tpu_custom_call.1} parent=11 // pred_region
          _
        $region24: #{tpu_custom_call.1} parent=11 // pred_fallthru
          _
        // Predicated region
        $region25: #{tpu_custom_call.1} parent=11 // pred_check
          %p260 = pneg %p210
        $region26: #{tpu_custom_call.1} parent=11 // pred_check_branch
          %262 = sbr.rel (%p260) target = $region28
        $region27: #{tpu_custom_call.1} parent=11 // pred_region
          _
        $region28: #{tpu_custom_call.1} parent=11 // pred_fallthru
          _
      $region12: #{tpu_custom_call.1} parent=5 // pred_fallthru
        _
      %p263 = scmp.lt.s32.totalorder %s22, 2
      // Predicated region
      $region29: #{tpu_custom_call.1} parent=5 // pred_check
        %p264 = pneg %p263
      $region30: #{tpu_custom_call.1} parent=5 // pred_check_branch
        %266 = sbr.rel (%p264) target = $region32
      $region31: #{tpu_custom_call.1} parent=5 // pred_region
        // Predicated region
        $region33: #{tpu_custom_call.1} parent=31 // pred_check
          %p267 = pneg %p42
        $region34: #{tpu_custom_call.1} parent=31 // pred_check_branch
          %269 = sbr.rel (%p267) target = $region36
        $region35: #{tpu_custom_call.1} parent=31 // pred_region
          %p270 = scmp.lt.s32.totalorder %s22, 1
          %s271 = scalar_select %p270, %s22, 1
          %s272 = smul.addr %s271, 2
          %s273 = smul.addr %s272, 8
          %s274 = scalar_lea.vmem %s0, %s273
        $region36: #{tpu_custom_call.1} parent=31 // pred_fallthru
          _
        // Predicated region
        $region37: #{tpu_custom_call.1} parent=31 // pred_check
          %p275 = pneg %p68
        $region38: #{tpu_custom_call.1} parent=31 // pred_check_branch
          %277 = sbr.rel (%p275) target = $region40
        $region39: #{tpu_custom_call.1} parent=31 // pred_region
          %s278 = sand.u32 %s58, 1
          %s279 = scalar_lea.sflag [#allocation4], %s278
          %s280 = sand.u32 %s58, 1
          %s281 = smul.addr %s280, 8
          %s282 = scalar_lea.vmem [#allocation3], %s281
          %284 = vsyncadd %s279, 0
          %s285 = smul.addr %s22, 8
          %s286 = scalar_lea.hbm %s1, %s285
          %s288 = sshll.u32 %s286, 4
          %s289 = int_to_ptr.hbm [resolvable:$true] %s288
          %s290 = sshll.u32 %s282, 4
          %s291 = int_to_ptr.vmem [resolvable:$true] %s290
          %293 = dma.hbm_to_vmem [thread:$0]  %s289, 128, %s291, %s279
        $region40: #{tpu_custom_call.1} parent=31 // pred_fallthru
          _
        // Predicated region
        $region41: #{tpu_custom_call.1} parent=31 // pred_check
          %p294 = pneg %p94
        $region42: #{tpu_custom_call.1} parent=31 // pred_check_branch
          %296 = sbr.rel (%p294) target = $region44
        $region43: #{tpu_custom_call.1} parent=31 // pred_region
          %p297 = scmp.lt.s32.totalorder %s22, 1
          %s298 = scalar_select %p297, %s22, 1
          %s299 = smul.addr %s298, 2
          %s300 = smul.addr %s299, 8
          %s301 = scalar_lea.vmem %s2, %s300
        $region44: #{tpu_custom_call.1} parent=31 // pred_fallthru
          _
        // Predicated region
        $region45: #{tpu_custom_call.1} parent=31 // pred_check
          %p302 = pneg %p120
        $region46: #{tpu_custom_call.1} parent=31 // pred_check_branch
          %304 = sbr.rel (%p302) target = $region48
        $region47: #{tpu_custom_call.1} parent=31 // pred_region
          %p305 = scmp.lt.s32.totalorder %s22, 1
          %s306 = scalar_select %p305, %s22, 1
          %s307 = scalar_lea.vmem %s3, %s306
        $region48: #{tpu_custom_call.1} parent=31 // pred_fallthru
          _
      $region32: #{tpu_custom_call.1} parent=5 // pred_fallthru
        _
      %p308 = scmp.le.s32.totalorder 1, %s22
      %p309 = scmp.lt.s32.totalorder %s22, 3
      %p310 = pnand %p308, %p309
      %p311 = pneg %p310
      // Predicated region
      $region49: #{tpu_custom_call.1} parent=5 // pred_check
        _
      $region50: #{tpu_custom_call.1} parent=5 // pred_check_branch
        %313 = sbr.rel (%p310) target = $region52
      $region51: #{tpu_custom_call.1} parent=5 // pred_region
        %s314 = ssub.s32 %s22, 1
        %s315 = sand.u32 %s61, 1
        %s316 = scalar_lea.sflag [#allocation4], %s315
        %s317 = sand.u32 %s61, 1
        %s318 = smul.addr %s317, 8
        %s319 = scalar_lea.vmem [#allocation3], %s318
        // Predicated region
        $region53: #{tpu_custom_call.1} parent=51 // pred_check
          %p320 = pneg %p74
        $region54: #{tpu_custom_call.1} parent=51 // pred_check_branch
          %322 = sbr.rel (%p320) target = $region56
        $region55: #{tpu_custom_call.1} parent=51 // pred_region
          %324 = dma.done %s316, 128
        $region56: #{tpu_custom_call.1} parent=51 // pred_fallthru
          _
        %p325 = scmp.lt.s32.totalorder %s27, 1
        %s326 = scalar_select %p325, %s27, 1
        %s327 = smul.addr %s326, 2
        %s328 = smul.addr %s327, 8
        %s329 = scalar_lea.vmem %s0, %s328
        %p330 = pneg %p48
        %p331 = pneg %p45
        %s332 = sand.u32 %s61, 1
        %s333 = scalar_lea.sflag [#allocation4], %s332
        %s334 = sand.u32 %s61, 1
        %s335 = smul.addr %s334, 8
        %s336 = scalar_lea.vmem [#allocation3], %s335
        %p337 = pneg %p74
        %p338 = pneg %p71
        %p339 = scmp.lt.s32.totalorder %s27, 1
        %s340 = scalar_select %p339, %s27, 1
        %s341 = smul.addr %s340, 2
        %s342 = smul.addr %s341, 8
        %s343 = scalar_lea.vmem %s2, %s342
        %p344 = pneg %p100
        %p345 = pneg %p97
        %p346 = scmp.lt.s32.totalorder %s27, 1
        %s347 = scalar_select %p346, %s27, 1
        %s348 = scalar_lea.vmem %s3, %s347
        %p349 = pneg %p126
        %p350 = pneg %p123
        %p351 = pneg %p147
        %p352 = pneg %p144
        %p353 = pneg %p168
        %p354 = pneg %p165
        %p355 = pneg %p189
        %p356 = pneg %p186
        %p357 = pneg %p210
        %p358 = pneg %p207
        %p359 = pneg %p236
        %p360 = pneg %p233
        %s361 = sand.u32 %s223, 1
        %s362 = scalar_lea.sflag [#allocation5], %s361
        %s363 = sand.u32 %s223, 1
        %s364 = smul.addr %s363, 16
        %s365 = scalar_lea.vmem [#allocation6], %s364
        %p366 = scmp.lt.s32.totalorder %s27, 1
        %s367 = scalar_select %p366, %s27, 1
        %s368 = smul.addr %s367, 2
        %s369 = smul.addr %s368, 8
        %s370 = scalar_lea.vmem %s0, %s369
        %p371 = scmp.lt.s32.totalorder %s27, 1
        %s372 = scalar_select %p371, %s27, 1
        %s373 = smul.addr %s372, 2
        %s374 = smul.addr %s373, 8
        %s375 = scalar_lea.vmem %s2, %s374
        %p376 = scmp.lt.s32.totalorder %s27, 1
        %s377 = scalar_select %p376, %s27, 1
        %s378 = scalar_lea.vmem %s3, %s377
        %v379 = vld [vmem:[%s370] sm:$0xff]
        %v380 = vld [vmem:[%s370 + $0x8] sm:$0xff]
        %v381 = vld [vmem:[%s319] sm:$0xff]
        %v382 = vld [vmem:[%s375] sm:$0xff]
        %v383 = vld [vmem:[%s375 + $0x8] sm:$0xff]
        %v384 = vld [vmem:[%s378] sm:$0x1]
        %v385 = vld [vmem:[%s4] sm:$0x1]
        %v386 = vld [vmem:[%s5] sm:$0x1]
        %v387 = vld [vmem:[%s6] sm:$0x1]
        %v388 = vld [vmem:[#allocation2] sm:$0x1]
        %v390 = vperm.slane %v385, 0
        %v392 = vmul.f32 %v379, %v390
        %v393 = vmul.f32 %v380, %v390
        %vm394 = vcmask 261120
        %v395 = vsel %vm394, %v392, 0.0
        %396 = vadd.xlane.f32.xlu0 %v395
        %v397 = vpop.xlane.xlu0 %396
        %v398 = vsel %vm394, %v393, 0.0
        %399 = vadd.xlane.f32.xlu0 %v398
        %v400 = vpop.xlane.xlu0 %399
        %v402 = vsel %vm394, %v386, 0
        %v405 = vsel %vm394, %v381, 0
        %407 = vmatpush.xpose.msra.mxu0 0.0
        %408 = vmatpush.xpose.msra.mxu0 0.0
        %409 = vmatpush.xpose.msra.mxu0 0.0
        %410 = vmatpush.xpose.msra.mxu0 0.0
        %411 = vmatpush.xpose.msra.mxu0 0.0
        %412 = vmatpush.xpose.msra.mxu0 0.0
        %413 = vmatpush.xpose.msra.mxu0 0.0
        %414 = vmatpush.xpose.msra.mxu0 0.0
        %415 = vmatpush.xpose.msra.mxu0 0.0
        %416 = vmatpush.xpose.msra.mxu0 0.0
        %417 = vmatpush.xpose.msra.mxu0 0.0
        %418 = vmatpush.xpose.msra.mxu0 0.0
        %419 = vmatpush.xpose.msra.mxu0 0.0
        %420 = vmatpush.xpose.msra.mxu0 0.0
        %421 = vmatpush.xpose.msra.mxu0 0.0
        %422 = vmatpush.xpose.msra.mxu0 %v405
        %423 = vmatmul.f32.gmra.mxu0 %v402
        %v424 = vpop.f32.mrf.mxu0
        %v425 = vadd.f32 0.0, %v424
        %426 = vdwg.mxu0
        %v428 = vperm.slane %v387, 0
        %v430 = vmul.f32 %v379, %v428
        %v431 = vmul.f32 %v380, %v428
        %v433 = vsel %vm394, %v430, 0
        %v436 = vsel %vm394, %v431, 0
        %438 = vmatpush.xpose.msra.mxu0 0.0
        %439 = vmatpush.xpose.msra.mxu0 0.0
        %440 = vmatpush.xpose.msra.mxu0 0.0
        %441 = vmatpush.xpose.msra.mxu0 0.0
        %442 = vmatpush.xpose.msra.mxu0 0.0
        %443 = vmatpush.xpose.msra.mxu0 0.0
        %444 = vmatpush.xpose.msra.mxu0 0.0
        %445 = vmatpush.xpose.msra.mxu0 0.0
        %446 = vmatpush.xpose.msra.mxu0 0.0
        %447 = vmatpush.xpose.msra.mxu0 0.0
        %448 = vmatpush.xpose.msra.mxu0 0.0
        %449 = vmatpush.xpose.msra.mxu0 0.0
        %450 = vmatpush.xpose.msra.mxu0 0.0
        %451 = vmatpush.xpose.msra.mxu0 0.0
        %452 = vmatpush.xpose.msra.mxu0 0.0
        %453 = vmatpush.xpose.msra.mxu0 %v405
        %454 = vmatmul.f32.gmra.mxu0 %v433
        %v455 = vpop.f32.mrf.mxu0
        %v456 = vadd.f32 %v397, %v455
        %457 = vmatmul.f32.gmra.mxu0 %v436
        %v458 = vpop.f32.mrf.mxu0
        %v459 = vadd.f32 %v400, %v458
        %460 = vdwg.mxu0
        %v461 = vperm.slane %v425, 0
        %v462 = vadd.f32 %v456, %v461
        %v463 = vadd.f32 %v459, %v461
        %v465 = vperm.slane %v388, 0
        %466 = vset.pattern.permute.xlu0 0
        %467 = vperm.xlu0 %466, %v465
        %v468 = vpop.permute.xlu0 %467
        %v470 = vadd.f32 %v462, %v468
        %v471 = vadd.f32 %v463, %v468
        %v473 = vperm.slane %v384, 0
        %v475 = vmul.f32 %v470, %v473
        %v476 = vmul.f32 %v471, %v473
        %v477 = vsub.f32 1.0, %v384
        %v478 = vmul.f32 %v477, -1e+30
        %v480 = vperm.slane %v478, 0
        %v482 = vadd.f32 %v475, %v480
        %v483 = vadd.f32 %v476, %v480
        %vm484 = vcmask 64512
        %v485 = vsel %vm484, %v482, -inf
        %486 = vmax.xlane.f32.xlu0 %v485
        %v487 = vpop.xlane.xlu0 %486
        %v488 = vsel %vm484, %v483, -inf
        %489 = vmax.xlane.f32.xlu0 %v488
        %v490 = vpop.xlane.xlu0 %489
        %v491 = vsub.f32 %v482, %v487
        %v492 = vsub.f32 %v483, %v490
        %v493 = vmul.f32 %v491, 1.442695
        %v494 = vpow.pop %v493
        %v495 = vmul.f32 %v492, 1.442695
        %v496 = vpow.pop %v495
        %v497 = vsel %vm484, %v494, 0.0
        %498 = vadd.xlane.f32.xlu0 %v497
        %v499 = vpop.xlane.xlu0 %498
        %v500 = vsel %vm484, %v496, 0.0
        %501 = vadd.xlane.f32.xlu0 %v500
        %v502 = vpop.xlane.xlu0 %501
        %v503 = vrcp.pop %v499
        %v504 = vmul.f32 %v499, %v503
        %v505 = vsub.f32 1.0, %v504
        %v506 = vmul.f32 %v503, %v505
        %v507 = vadd.f32 %v503, %v506
        %vm508 = vweird.f32 %v499
        %vm509 = vweird.f32 %v503
        %vm510 = vmor %vm508, %vm509
        %v511 = vsel %vm510, %v503, %v507
        %v512 = vand.u32 2147483647, %v499
        %vm513 = vcmp.eq.f32.partialorder %v512, 8.507059e+37
        %v514 = vand.u32 %v499, 2147483648
        %v515 = vor.u32 1.1754944e-38, %v514
        %v516 = vsel %vm513, %v515, %v511
        %v517 = vmul.f32 %v494, %v516
        %v518 = vrcp.pop %v502
        %v519 = vmul.f32 %v502, %v518
        %v520 = vsub.f32 1.0, %v519
        %v521 = vmul.f32 %v518, %v520
        %v522 = vadd.f32 %v518, %v521
        %vm523 = vweird.f32 %v502
        %vm524 = vweird.f32 %v518
        %vm525 = vmor %vm523, %vm524
        %v526 = vsel %vm525, %v518, %v522
        %v527 = vand.u32 2147483647, %v502
        %vm528 = vcmp.eq.f32.partialorder %v527, 8.507059e+37
        %v529 = vand.u32 %v502, 2147483648
        %v530 = vor.u32 1.1754944e-38, %v529
        %v531 = vsel %vm528, %v530, %v526
        %v532 = vmul.f32 %v496, %v531
        %534 = vset.pattern.permute.xlu0 0
        %535 = vperm.xlu0 %534, %v382
        %v536 = vpop.permute.xlu0 %535
        %539 = vset.pattern.permute.xlu0 0
        %540 = vperm.xlu0 %539, %v383
        %v541 = vpop.permute.xlu0 %540
        %v543 = vmul.f32 %v470, %v536
        %v544 = vmul.f32 %v471, %v541
        %v545 = vsub.f32 1.0, %v382
        %v546 = vsub.f32 1.0, %v383
        %v547 = vmul.f32 %v545, -1e+30
        %v548 = vmul.f32 %v546, -1e+30
        %550 = vset.pattern.permute.xlu0 0
        %551 = vperm.xlu0 %550, %v547
        %v552 = vpop.permute.xlu0 %551
        %555 = vset.pattern.permute.xlu0 0
        %556 = vperm.xlu0 %555, %v548
        %v557 = vpop.permute.xlu0 %556
        %v559 = vadd.f32 %v543, %v552
        %v560 = vadd.f32 %v544, %v557
        %v561 = vsel %vm484, %v559, -inf
        %v562 = vsel %vm484, %v560, -inf
        %v563 = vmax.f32 %v561, %v562
        %v564 = vrot.slane %v563, 4
        %v565 = vmax.f32 %v563, %v564
        %v566 = vrot.slane %v565, 2
        %v567 = vmax.f32 %v565, %v566
        %v568 = vrot.slane %v567, 1
        %v569 = vmax.f32 %v567, %v568
        %v570 = vsub.f32 %v559, %v569
        %v571 = vsub.f32 %v560, %v569
        %v572 = vmul.f32 %v570, 1.442695
        %v573 = vpow.pop %v572
        %v574 = vmul.f32 %v571, 1.442695
        %v575 = vpow.pop %v574
        %v576 = vsel %vm484, %v573, 0.0
        %v577 = vsel %vm484, %v575, 0.0
        %v578 = vadd.f32 %v576, %v577
        %v579 = vrot.slane %v578, 4
        %v580 = vadd.f32 %v578, %v579
        %v581 = vrot.slane %v580, 2
        %v582 = vadd.f32 %v580, %v581
        %v583 = vrot.slane %v582, 1
        %v584 = vadd.f32 %v582, %v583
        %v585 = vrcp.pop %v584
        %v586 = vmul.f32 %v584, %v585
        %v587 = vsub.f32 1.0, %v586
        %v588 = vmul.f32 %v585, %v587
        %v589 = vadd.f32 %v585, %v588
        %vm590 = vweird.f32 %v584
        %vm591 = vweird.f32 %v585
        %vm592 = vmor %vm590, %vm591
        %v593 = vsel %vm592, %v585, %v589
        %v594 = vand.u32 2147483647, %v584
        %vm595 = vcmp.eq.f32.partialorder %v594, 8.507059e+37
        %v596 = vand.u32 %v584, 2147483648
        %v597 = vor.u32 1.1754944e-38, %v596
        %v598 = vsel %vm595, %v597, %v593
        %v599 = vmul.f32 %v573, %v598
        %v600 = vmul.f32 %v575, %v598
        %v602 = vsel %vm484, %v517, 0
        %v605 = vsel %vm484, %v532, 0
        %607 = vmatpush.msra.mxu0 0.0
        %608 = vmatpush.msra.mxu0 0.0
        %609 = vmatpush.msra.mxu0 0.0
        %610 = vmatpush.msra.mxu0 0.0
        %611 = vmatpush.msra.mxu0 0.0
        %612 = vmatpush.msra.mxu0 0.0
        %613 = vmatpush.msra.mxu0 0.0
        %614 = vmatpush.msra.mxu0 0.0
        %615 = vmatpush.msra.mxu0 0.0
        %616 = vmatpush.msra.mxu0 0.0
        %617 = vmatpush.msra.mxu0 0.0
        %618 = vmatpush.msra.mxu0 0.0
        %619 = vmatpush.msra.mxu0 0.0
        %620 = vmatpush.msra.mxu0 0.0
        %621 = vmatpush.msra.mxu0 0.0
        %622 = vmatpush.msra.mxu0 %v381
        %623 = vmatmul.f32.gmra.mxu0 %v602
        %v624 = vpop.f32.mrf.mxu0
        %v625 = vadd.f32 0.0, %v624
        %626 = vmatmul.f32.gmra.mxu0 %v605
        %v627 = vpop.f32.mrf.mxu0
        %v628 = vadd.f32 0.0, %v627
        %629 = vdwg.mxu0
        %v631 = vsel %vm484, %v599, 0
        %v634 = vsel %vm484, %v600, 0
        %636 = vmatpush.xpose.msra.mxu0 0.0
        %637 = vmatpush.xpose.msra.mxu0 0.0
        %638 = vmatpush.xpose.msra.mxu0 0.0
        %639 = vmatpush.xpose.msra.mxu0 0.0
        %640 = vmatpush.xpose.msra.mxu0 0.0
        %641 = vmatpush.xpose.msra.mxu0 0.0
        %642 = vmatpush.xpose.msra.mxu0 0.0
        %643 = vmatpush.xpose.msra.mxu0 0.0
        %644 = vmatpush.xpose.msra.mxu0 0.0
        %645 = vmatpush.xpose.msra.mxu0 0.0
        %646 = vmatpush.xpose.msra.mxu0 0.0
        %647 = vmatpush.xpose.msra.mxu0 0.0
        %648 = vmatpush.xpose.msra.mxu0 0.0
        %649 = vmatpush.xpose.msra.mxu0 0.0
        %650 = vmatpush.xpose.msra.mxu0 %v634
        %651 = vmatpush.xpose.msra.mxu0 %v631
        %652 = vmatmul.f32.gmra.mxu0 %v602
        %v653 = vpop.f32.mrf.mxu0
        %v654 = vadd.f32 0.0, %v653
        %655 = vmatmul.f32.gmra.mxu0 %v605
        %v656 = vpop.f32.mrf.mxu0
        %v657 = vadd.f32 0.0, %v656
        %658 = vdwg.mxu0
        %vm659 = vcmask 130048
        %v661 = vsel %vm659, %v654, 0
        %v664 = vsel %vm659, %v657, 0
        %666 = vmatpush.msra.mxu0 0.0
        %667 = vmatpush.msra.mxu0 0.0
        %668 = vmatpush.msra.mxu0 0.0
        %669 = vmatpush.msra.mxu0 0.0
        %670 = vmatpush.msra.mxu0 0.0
        %671 = vmatpush.msra.mxu0 0.0
        %672 = vmatpush.msra.mxu0 0.0
        %673 = vmatpush.msra.mxu0 0.0
        %674 = vmatpush.msra.mxu0 0.0
        %675 = vmatpush.msra.mxu0 0.0
        %676 = vmatpush.msra.mxu0 0.0
        %677 = vmatpush.msra.mxu0 0.0
        %678 = vmatpush.msra.mxu0 0.0
        %679 = vmatpush.msra.mxu0 0.0
        %680 = vmatpush.msra.mxu0 %v380
        %681 = vmatpush.msra.mxu0 %v379
        %682 = vmatmul.f32.gmra.mxu0 %v661
        %v683 = vpop.f32.mrf.mxu0
        %v684 = vadd.f32 0.0, %v683
        %685 = vmatmul.f32.gmra.mxu0 %v664
        %v686 = vpop.f32.mrf.mxu0
        %v687 = vadd.f32 0.0, %v686
        %688 = vdwg.mxu0
        %v689 = vmul.f32 %v379, %v625
        %v690 = vmul.f32 %v380, %v628
        %v691 = vmul.f32 %v379, %v684
        %v692 = vmul.f32 %v380, %v687
        %695 = vrot.lane.b32.xlu0 %v625, 32
        %v696 = vpop.permute.xlu0 %695
        %697 = vrot.lane.b32.xlu0 %v628, 32
        %v698 = vpop.permute.xlu0 %697
        %703 = vrot.lane.b32.xlu0 %v689, 64
        %v704 = vpop.permute.xlu0 %703
        %705 = vrot.lane.b32.xlu0 %v690, 64
        %v706 = vpop.permute.xlu0 %705
        %711 = vrot.lane.b32.xlu0 %v691, 96
        %v712 = vpop.permute.xlu0 %711
        %713 = vrot.lane.b32.xlu0 %v692, 96
        %v714 = vpop.permute.xlu0 %713
        %v717 = vsel %vm394, %v379, %v696
        %v718 = vsel %vm394, %v380, %v698
        %vm719 = vcmask 523264
        %v720 = vsel %vm719, %v717, %v704
        %v721 = vsel %vm719, %v718, %v706
        %vm722 = vcmask 785408
        %v723 = vsel %vm722, %v720, %v712
        %v724 = vsel %vm722, %v721, %v714
        %725 = vst [vmem:[%s365] sm:$0xff] %v723
        %726 = vst [vmem:[%s365 + $0x8] sm:$0xff] %v724
        %s727 = sand.u32 %s223, 1
        %s728 = scalar_lea.sflag [#allocation5], %s727
        %s729 = sand.u32 %s223, 1
        %s730 = smul.addr %s729, 16
        %s731 = scalar_lea.vmem [#allocation6], %s730
        // Predicated region
        $region57: #{tpu_custom_call.1} parent=51 // pred_check
          %p732 = pneg %p233
        $region58: #{tpu_custom_call.1} parent=51 // pred_check_branch
          %734 = sbr.rel (%p732) target = $region60
        $region59: #{tpu_custom_call.1} parent=51 // pred_region
          %736 = vsyncadd %s728, 0
          %s737 = smul.addr %s27, 2
          %s738 = smul.addr %s737, 8
          %s739 = scalar_lea.hbm %s8, %s738
          %s740 = sshll.u32 %s731, 4
          %s741 = int_to_ptr.vmem [resolvable:$true] %s740
          %s742 = sshll.u32 %s739, 4
          %s743 = int_to_ptr.hbm [resolvable:$true] %s742
          %748 = dma.vmem_to_hbm [thread:$0]  %s741, 256, %s743, %s728, 128, 128, 8
        $region60: #{tpu_custom_call.1} parent=51 // pred_fallthru
          _
      $region52: #{tpu_custom_call.1} parent=5 // pred_fallthru
        _
      %p749 = scmp.le.s32.totalorder 2, %s22
      // Predicated region
      $region61: #{tpu_custom_call.1} parent=5 // pred_check
        %p750 = pneg %p749
      $region62: #{tpu_custom_call.1} parent=5 // pred_check_branch
        %752 = sbr.rel (%p750) target = $region64
      $region63: #{tpu_custom_call.1} parent=5 // pred_region
        %s753 = ssub.s32 %s22, 2
        // Predicated region
        $region65: #{tpu_custom_call.1} parent=63 // pred_check
          %p754 = pneg %p239
        $region66: #{tpu_custom_call.1} parent=63 // pred_check_branch
          %756 = sbr.rel (%p754) target = $region68
        $region67: #{tpu_custom_call.1} parent=63 // pred_region
          %s757 = sand.u32 %s224, 1
          %s758 = scalar_lea.sflag [#allocation5], %s757
          %s759 = sand.u32 %s224, 1
          %s760 = smul.addr %s759, 16
          %s761 = scalar_lea.vmem [#allocation6], %s760
          %763 = dma.done %s758, 256
        $region68: #{tpu_custom_call.1} parent=63 // pred_fallthru
          _
      $region64: #{tpu_custom_call.1} parent=5 // pred_fallthru
        _
    $region6: #{tpu_custom_call.1} parent=1 // loop_footer
      %s26 = sadd.s32 1, %s22
    $region7: #{tpu_custom_call.1} parent=1 // loop_footer_branch
      %21 = sbr.rel target = $region3
    $region8: #{tpu_custom_call.1} parent=1 // loop_exit
      _
    %764 = vsyncpa [#allocation4], 1
    %s765 = scalar_lea.sflag [#allocation4], 1
    %766 = vsyncpa %s765, 1
    %767 = vsyncpa [#allocation5], 1
    %s768 = scalar_lea.sflag [#allocation5], 1
    %769 = vsyncpa %s768, 1

</llo_original>
